<compile_context>
chip_gen: v7x
topology: tpu7x:2x2x1
jax: 0.10.0
libtpu: 0.0.40
codegen_flags: <defaults>
</compile_context>

<pallas_src>
import jax
import jax.numpy as jnp
from jax.experimental import pallas as pl
from jax.experimental.pallas import tpu as pltpu

EPS = 1e-5  # PyTorch BatchNorm2d default


# ----------------------------------------------------------------------------
# Kernel: fused attention gate over one (image, pixel-tile) block.
#   g_ref: (1, Fg, t)   x_ref: (1, Fl, t)   o_ref: (1, Fl, t)
#   wg:    (Fint, Fg)   wx:    (Fint, Fl)   b: (Fint, 1)  wp: (Fint, 1)  bp: (1, 1)
# ----------------------------------------------------------------------------
def _attention_gate_kernel(g_ref, x_ref, wg_ref, wx_ref, b_ref, wp_ref, bp_ref,
                           o_ref):
    gt = g_ref[0].astype(jnp.float32)            # (Fg, t)  channels=sublanes, pixels=lanes
    xt = x_ref[0].astype(jnp.float32)            # (Fl, t)

    # a = ReLU(Wg·g + Wx·x + b)   (BN + conv bias folded; biases pre-summed)
    g1 = jnp.dot(wg_ref[...], gt, preferred_element_type=jnp.float32)   # (Fint, t)
    x1 = jnp.dot(wx_ref[...], xt, preferred_element_type=jnp.float32)   # (Fint, t)
    a = jnp.maximum(g1 + x1 + b_ref[...], 0.0)                           # (Fint, t)

    # psi = sigmoid(wp·a + bp): VPU multiply + sublane reduce (no width-1 MXU dot)
    psi_pre = jnp.sum(a * wp_ref[...], axis=0, keepdims=True) + bp_ref[...]   # (1, t)
    psi = 1.0 / (1.0 + jnp.exp(-psi_pre))                                     # EUP exp

    o_ref[0] = (xt * psi).astype(o_ref.dtype)    # gate x, broadcast over channel sublanes


# ----------------------------------------------------------------------------
# Host-side helpers
# ----------------------------------------------------------------------------
def _fold_bn_into_conv1x1(w_oihw, conv_bias, gamma, beta, mean, var):
    """Fold inference-mode BatchNorm2d + conv bias into (Cout, Cin) weight / (Cout,) bias."""
    s = gamma / jnp.sqrt(var + EPS)            # (Cout,)
    w = w_oihw[:, :, 0, 0] * s[:, None]        # (Cout, Cin) — ready for dot(W, pixels)
    b = s * (conv_bias - mean) + beta          # (Cout,)
    return w, b


def attention_block_forward(g_nchw, x_nchw, p, *, t_hw=2048):
    """Pallas implementation of Attention_block.forward. Inputs/outputs NCHW."""
    N, Fg, H, W = g_nchw.shape
    Fl = x_nchw.shape[1]
    assert x_nchw.shape == (N, Fl, H, W)
    Fint = p["wg"].shape[0]
    HW = H * W

    # Fold BN + conv bias into the weights; pre-sum the two input-branch biases.
    wg, bg = _fold_bn_into_conv1x1(p["wg"], p["bg"], p["bng_g"], p["bng_b"],
                                   p["bng_m"], p["bng_v"])        # (Fint, Fg)
    wx, bx = _fold_bn_into_conv1x1(p["wx"], p["bx"], p["bnx_g"], p["bnx_b"],
                                   p["bnx_m"], p["bnx_v"])        # (Fint, Fl)
    wp, bp = _fold_bn_into_conv1x1(p["wp"], p["bp"], p["bnp_g"], p["bnp_b"],
                                   p["bnp_m"], p["bnp_v"])        # (1, Fint), (1,)
    b_gx = (bg + bx).reshape(Fint, 1)
    wp_col = wp.reshape(1, Fint).T                                # (Fint, 1)
    bp_s = bp.reshape(1, 1)

    # NCHW -> (N, C, H*W): a free reshape (no transpose copy, no extra HBM traffic).
    gm = g_nchw.reshape(N, Fg, HW)
    xm = x_nchw.reshape(N, Fl, HW)

    itemsize = jnp.dtype(x_nchw.dtype).itemsize
    bytes_per_px = (Fg + 2 * Fl) * itemsize          # g in + x in + out per pixel

    # Cap the pixel tile so double-buffered tiles fit comfortably even on v7x (64 MiB/TC).
    VMEM_CAP = 48 << 20
    max_t = max(128, ((VMEM_CAP // (2 * bytes_per_px)) // 128) * 128)
    t_hw = min(t_hw, max_t)

    if HW <= t_hw:
        t = HW                                        # one tile per image, no padding
        n_hw = 1
        HW_pad = HW
    else:
        t = (t_hw // 128) * 128                       # lane-dense tile
        n_hw = pl.cdiv(HW, t)
        HW_pad = n_hw * t
        if HW_pad != HW:
            # TODO(synk): ragged-tail fallback pads the pixel axis (one extra HBM copy);
            # pick t dividing H*W to avoid it.
            gm = jnp.pad(gm, ((0, 0), (0, 0), (0, HW_pad - HW)))
            xm = jnp.pad(xm, ((0, 0), (0, 0), (0, HW_pad - HW)))

    # Raise the scoped VMEM limit if the double-buffered tiles need more than the
    # conservative v5e default (16 MiB); stay well below v7x's 64 MiB physical.
    weights_bytes = (Fg + Fl + 2) * Fint * 4
    vmem_needed = 2 * t * bytes_per_px + weights_bytes + (1 << 20)
    vmem_limit = int(min(2 * vmem_needed, 56 << 20)) if vmem_needed > (16 << 20) else None

    out = pl.pallas_call(
        _attention_gate_kernel,
        out_shape=jax.ShapeDtypeStruct((N, Fl, HW_pad), x_nchw.dtype),
        grid=(N, n_hw),
        in_specs=[
            pl.BlockSpec((1, Fg, t), lambda n, i: (n, 0, i)),     # g pixels
            pl.BlockSpec((1, Fl, t), lambda n, i: (n, 0, i)),     # x pixels
            pl.BlockSpec((Fint, Fg), lambda n, i: (0, 0)),        # W_g (BN-folded)
            pl.BlockSpec((Fint, Fl), lambda n, i: (0, 0)),        # W_x (BN-folded)
            pl.BlockSpec((Fint, 1), lambda n, i: (0, 0)),         # b_g + b_x (folded)
            pl.BlockSpec((Fint, 1), lambda n, i: (0, 0)),         # w_psi (folded)
            pl.BlockSpec((1, 1), lambda n, i: (0, 0)),            # b_psi (folded)
        ],
        out_specs=pl.BlockSpec((1, Fl, t), lambda n, i: (n, 0, i)),
        compiler_params=pltpu.CompilerParams(
            dimension_semantics=("parallel", "parallel"),
            vmem_limit_bytes=vmem_limit),
    )(gm, xm, wg, wx, b_gx, wp_col, bp_s)

    return out[:, :, :HW].reshape(N, Fl, H, W)        # free reshape back to NCHW


# ----------------------------------------------------------------------------
# Pure-JAX reference (inference-mode BatchNorm), for validation
# ----------------------------------------------------------------------------
def ref_attention_block(g, x, p):
    def bn(y, gm, b, m, v):
        return ((y - m[None, :, None, None]) /
                jnp.sqrt(v[None, :, None, None] + EPS) *
                gm[None, :, None, None] + b[None, :, None, None])

    def conv1x1(y, w, b):
        o = jax.lax.conv_general_dilated(
            y, w, (1, 1), [(0, 0), (0, 0)],
            dimension_numbers=("NCHW", "OIHW", "NCHW"))
        return o + b[None, :, None, None]

    g1 = bn(conv1x1(g, p["wg"], p["bg"]),
            p["bng_g"], p["bng_b"], p["bng_m"], p["bng_v"])
    x1 = bn(conv1x1(x, p["wx"], p["bx"]),
            p["bnx_g"], p["bnx_b"], p["bnx_m"], p["bnx_v"])
    a = jnp.maximum(g1 + x1, 0.0)
    psi = bn(conv1x1(a, p["wp"], p["bp"]),
             p["bnp_g"], p["bnp_b"], p["bnp_m"], p["bnp_v"])
    psi = 1.0 / (1.0 + jnp.exp(-psi))
    return x * psi


# ----------------------------------------------------------------------------
if __name__ == "__main__":
    key = jax.random.PRNGKey(0)
    N, F_g, F_l, F_int, H, W = 2, 8, 4, 4, 16, 16

    ks = jax.random.split(key, 20)
    params = {
        # W_g branch: Conv2d(F_g, F_int, 1, bias=True) + BatchNorm2d(F_int)
        "wg": jax.random.normal(ks[0], (F_int, F_g, 1, 1), jnp.float32) * 0.2,
        "bg": jax.random.normal(ks[1], (F_int,), jnp.float32) * 0.1,
        "bng_g": 1.0 + 0.1 * jax.random.normal(ks[2], (F_int,), jnp.float32),
        "bng_b": 0.1 * jax.random.normal(ks[3], (F_int,), jnp.float32),
        "bng_m": 0.1 * jax.random.normal(ks[4], (F_int,), jnp.float32),
        "bng_v": 1.0 + 0.1 * jax.random.uniform(ks[5], (F_int,), jnp.float32),
        # W_x branch: Conv2d(F_l, F_int, 1, bias=True) + BatchNorm2d(F_int)
        "wx": jax.random.normal(ks[6], (F_int, F_l, 1, 1), jnp.float32) * 0.2,
        "bx": jax.random.normal(ks[7], (F_int,), jnp.float32) * 0.1,
        "bnx_g": 1.0 + 0.1 * jax.random.normal(ks[8], (F_int,), jnp.float32),
        "bnx_b": 0.1 * jax.random.normal(ks[9], (F_int,), jnp.float32),
        "bnx_m": 0.1 * jax.random.normal(ks[10], (F_int,), jnp.float32),
        "bnx_v": 1.0 + 0.1 * jax.random.uniform(ks[11], (F_int,), jnp.float32),
        # psi branch: Conv2d(F_int, 1, 1, bias=True) + BatchNorm2d(1) + Sigmoid
        "wp": jax.random.normal(ks[12], (1, F_int, 1, 1), jnp.float32) * 0.2,
        "bp": jax.random.normal(ks[13], (1,), jnp.float32) * 0.1,
        "bnp_g": 1.0 + 0.1 * jax.random.normal(ks[14], (1,), jnp.float32),
        "bnp_b": 0.1 * jax.random.normal(ks[15], (1,), jnp.float32),
        "bnp_m": 0.1 * jax.random.normal(ks[16], (1,), jnp.float32),
        "bnp_v": 1.0 + 0.1 * jax.random.uniform(ks[17], (1,), jnp.float32),
    }

    g = jax.random.normal(ks[18], (N, F_g, H, W), jnp.float32)
    x = jax.random.normal(ks[19], (N, F_l, H, W), jnp.float32)

    out = jax.block_until_ready(attention_block_forward(g, x, params))
    ref = jax.block_until_ready(ref_attention_block(g, x, params))

    assert out.shape == (N, F_l, H, W), out.shape
    assert jnp.allclose(out, ref, atol=1e-4, rtol=1e-4), (
        float(jnp.max(jnp.abs(out - ref))))
    print("KERNEL_OK")
</pallas_src>

<mosaic_0001>
module attributes {stable_mosaic.version = 11 : i64} {
  func.func @_attention_gate_kernel(%arg0: i32, %arg1: i32, %arg2: memref<1x8x256xf32, #tpu.memory_space<vmem>>, %arg3: memref<1x4x256xf32, #tpu.memory_space<vmem>>, %arg4: memref<4x8xf32, #tpu.memory_space<vmem>>, %arg5: memref<4x4xf32, #tpu.memory_space<vmem>>, %arg6: memref<4x1xf32, #tpu.memory_space<vmem>>, %arg7: memref<4x1xf32, #tpu.memory_space<vmem>>, %arg8: memref<1x1xf32, #tpu.memory_space<vmem>>, %arg9: memref<1x4x256xf32, #tpu.memory_space<vmem>>) attributes {dimension_semantics = [#tpu.dimension_semantics<parallel>, #tpu.dimension_semantics<parallel>], iteration_bounds = array<i64: 2, 1>, scalar_prefetch = 0 : i64, scratch_operands = 0 : i64, tpu.core_type = #tpu.core_type<tc>, window_params = [{transform_indices = @transform_0, window_bounds = array<i64: 1, 8, 256>}, {transform_indices = @transform_1, window_bounds = array<i64: 1, 4, 256>}, {pipeline_mode = #tpu.pipeline_mode<synchronous>, transform_indices = @transform_2, window_bounds = array<i64: 4, 8>}, {pipeline_mode = #tpu.pipeline_mode<synchronous>, transform_indices = @transform_3, window_bounds = array<i64: 4, 4>}, {pipeline_mode = #tpu.pipeline_mode<synchronous>, transform_indices = @transform_4, window_bounds = array<i64: 4, 1>}, {pipeline_mode = #tpu.pipeline_mode<synchronous>, transform_indices = @transform_5, window_bounds = array<i64: 4, 1>}, {pipeline_mode = #tpu.pipeline_mode<synchronous>, transform_indices = @transform_6, window_bounds = array<i64: 1, 1>}, {transform_indices = @transform_7, window_bounds = array<i64: 1, 4, 256>}]} {
    %c0 = arith.constant 0 : index
    %c0_0 = arith.constant 0 : index
    %c0_1 = arith.constant 0 : index
    %0 = vector.load %arg2[%c0, %c0_0, %c0_1] : memref<1x8x256xf32, #tpu.memory_space<vmem>>, vector<1x8x256xf32>
    %1 = vector.shape_cast %0 : vector<1x8x256xf32> to vector<8x256xf32>
    %c0_2 = arith.constant 0 : index
    %c0_3 = arith.constant 0 : index
    %c0_4 = arith.constant 0 : index
    %2 = vector.load %arg3[%c0_2, %c0_3, %c0_4] : memref<1x4x256xf32, #tpu.memory_space<vmem>>, vector<1x4x256xf32>
    %3 = vector.shape_cast %2 : vector<1x4x256xf32> to vector<4x256xf32>
    %c0_5 = arith.constant 0 : index
    %c0_6 = arith.constant 0 : index
    %4 = vector.load %arg4[%c0_5, %c0_6] : memref<4x8xf32, #tpu.memory_space<vmem>>, vector<4x8xf32>
    %cst = arith.constant dense<0.000000e+00> : vector<4x256xf32>
    %5 = tpu.matmul %4, %1, %cst {dimension_numbers = #tpu.dot_dimension_numbers<[1], [0], [0], [1], [0, 0, 1, 1], [], []>} : vector<4x8xf32>, vector<8x256xf32>, vector<4x256xf32> -> vector<4x256xf32>
    %c0_7 = arith.constant 0 : index
    %c0_8 = arith.constant 0 : index
    %6 = vector.load %arg5[%c0_7, %c0_8] : memref<4x4xf32, #tpu.memory_space<vmem>>, vector<4x4xf32>
    %cst_9 = arith.constant dense<0.000000e+00> : vector<4x256xf32>
    %7 = tpu.matmul %6, %3, %cst_9 {dimension_numbers = #tpu.dot_dimension_numbers<[1], [0], [0], [1], [0, 0, 1, 1], [], []>} : vector<4x4xf32>, vector<4x256xf32>, vector<4x256xf32> -> vector<4x256xf32>
    %8 = arith.addf %5, %7 : vector<4x256xf32>
    %c0_10 = arith.constant 0 : index
    %c0_11 = arith.constant 0 : index
    %9 = vector.load %arg6[%c0_10, %c0_11] : memref<4x1xf32, #tpu.memory_space<vmem>>, vector<4x1xf32>
    %10 = vector.broadcast %9 : vector<4x1xf32> to vector<4x256xf32>
    %11 = arith.addf %8, %10 : vector<4x256xf32>
    %cst_12 = arith.constant 0.000000e+00 : f32
    %12 = vector.broadcast %cst_12 : f32 to vector<4x256xf32>
    %13 = arith.maximumf %11, %12 : vector<4x256xf32>
    %c0_13 = arith.constant 0 : index
    %c0_14 = arith.constant 0 : index
    %14 = vector.load %arg7[%c0_13, %c0_14] : memref<4x1xf32, #tpu.memory_space<vmem>>, vector<4x1xf32>
    %15 = vector.broadcast %14 : vector<4x1xf32> to vector<4x256xf32>
    %16 = arith.mulf %13, %15 : vector<4x256xf32>
    %cst_15 = arith.constant dense<0.000000e+00> : vector<256xf32>
    %17 = vector.multi_reduction <add>, %16, %cst_15 [0] : vector<4x256xf32> to vector<256xf32>
    %18 = vector.shape_cast %17 : vector<256xf32> to vector<1x256xf32>
    %c0_16 = arith.constant 0 : index
    %c0_17 = arith.constant 0 : index
    %19 = vector.load %arg8[%c0_16, %c0_17] : memref<1x1xf32, #tpu.memory_space<vmem>>, vector<1x1xf32>
    %20 = vector.broadcast %19 : vector<1x1xf32> to vector<1x256xf32>
    %21 = arith.addf %18, %20 : vector<1x256xf32>
    %cst_18 = arith.constant 0.000000e+00 : f32
    %22 = vector.broadcast %cst_18 : f32 to vector<1x256xf32>
    %23 = arith.subf %22, %21 : vector<1x256xf32>
    %24 = math.exp %23 : vector<1x256xf32>
    %cst_19 = arith.constant 1.000000e+00 : f32
    %25 = vector.broadcast %cst_19 : f32 to vector<1x256xf32>
    %26 = arith.addf %25, %24 : vector<1x256xf32>
    %cst_20 = arith.constant 1.000000e+00 : f32
    %27 = vector.broadcast %cst_20 : f32 to vector<1x256xf32>
    %28 = arith.divf %27, %26 : vector<1x256xf32>
    %29 = vector.broadcast %28 : vector<1x256xf32> to vector<4x256xf32>
    %30 = arith.mulf %3, %29 : vector<4x256xf32>
    %c0_21 = arith.constant 0 : index
    %c0_22 = arith.constant 0 : index
    %c0_23 = arith.constant 0 : index
    %31 = vector.load %arg9[%c0_21, %c0_22, %c0_23] : memref<1x4x256xf32, #tpu.memory_space<vmem>>, vector<1x4x256xf32>
    %32 = vector.shape_cast %31 : vector<1x4x256xf32> to vector<4x256xf32>
    %33 = vector.shape_cast %30 : vector<4x256xf32> to vector<1x4x256xf32>
    tpu.vector_store %arg9[%c0_21, %c0_22, %c0_23], %33 {strides = array<i32>} : memref<1x4x256xf32, #tpu.memory_space<vmem>>, vector<1x4x256xf32>,
    return
  }
  func.func @transform_0(%arg0: i32, %arg1: i32) -> (i32, i32, i32) {
    %c0_i32 = arith.constant 0 : i32
    %c0_i32_0 = arith.constant 0 : i32
    return %arg0, %c0_i32, %arg1 : i32, i32, i32
  }
  func.func @transform_1(%arg0: i32, %arg1: i32) -> (i32, i32, i32) {
    %c0_i32 = arith.constant 0 : i32
    %c0_i32_0 = arith.constant 0 : i32
    return %arg0, %c0_i32, %arg1 : i32, i32, i32
  }
  func.func @transform_2(%arg0: i32, %arg1: i32) -> (i32, i32) {
    %c0_i32 = arith.constant 0 : i32
    %c0_i32_0 = arith.constant 0 : i32
    %c0_i32_1 = arith.constant 0 : i32
    return %c0_i32, %c0_i32_0 : i32, i32
  }
  func.func @transform_3(%arg0: i32, %arg1: i32) -> (i32, i32) {
    %c0_i32 = arith.constant 0 : i32
    %c0_i32_0 = arith.constant 0 : i32
    %c0_i32_1 = arith.constant 0 : i32
    return %c0_i32, %c0_i32_0 : i32, i32
  }
  func.func @transform_4(%arg0: i32, %arg1: i32) -> (i32, i32) {
    %c0_i32 = arith.constant 0 : i32
    %c0_i32_0 = arith.constant 0 : i32
    %c0_i32_1 = arith.constant 0 : i32
    return %c0_i32, %c0_i32_0 : i32, i32
  }
  func.func @transform_5(%arg0: i32, %arg1: i32) -> (i32, i32) {
    %c0_i32 = arith.constant 0 : i32
    %c0_i32_0 = arith.constant 0 : i32
    %c0_i32_1 = arith.constant 0 : i32
    return %c0_i32, %c0_i32_0 : i32, i32
  }
  func.func @transform_6(%arg0: i32, %arg1: i32) -> (i32, i32) {
    %c0_i32 = arith.constant 0 : i32
    %c0_i32_0 = arith.constant 0 : i32
    %c0_i32_1 = arith.constant 0 : i32
    return %c0_i32, %c0_i32_0 : i32, i32
  }
  func.func @transform_7(%arg0: i32, %arg1: i32) -> (i32, i32, i32) {
    %c0_i32 = arith.constant 0 : i32
    %c0_i32_0 = arith.constant 0 : i32
    return %arg0, %c0_i32, %arg1 : i32, i32, i32
  }
}

</mosaic_0001>

<llo_original>
// kernel: tpu_custom_call.1
$region0: #{tpu_custom_call.1}
  #allocation0 [shape = 'u32[]', space=smem, size = 0x4, offset = 0x4, fixed_abs, tag = 'smem constant byte address 0x4 - core index']
  #allocation1 [shape = 'u32[144,128]{1,0:T(1,128)}', space=vmem, size = 0x12000, scoped, tag = 'internal scratch']
  #allocation2 [shape = 'f32[1,1]{1,0:T(1,128)S(1)}', space=vmem, size = 0x200, scoped, tag = 'scoped memory for tpu_custom_call.1']
  %s0 = inlined_call_operand.hbm [shape: f32[2,8,256], index: 0, kind: input, shape index: {}]
  %s1 = inlined_call_operand.vmem [shape: f32[2,4,256], index: 1, kind: input, shape index: {}]
  %s2 = inlined_call_operand.vmem [shape: f32[4,8], index: 2, kind: input, shape index: {}]
  %s3 = inlined_call_operand.vmem [shape: f32[4,4], index: 3, kind: input, shape index: {}]
  %s4 = inlined_call_operand.vmem [shape: f32[4,1], index: 4, kind: input, shape index: {}]
  %s5 = inlined_call_operand.vmem [shape: f32[4,1], index: 5, kind: input, shape index: {}]
  %s6 = inlined_call_operand.<no memory space> [shape: f32[1,1], index: 6, kind: input, shape index: {}]
  %s7 = inlined_call_operand.hbm [shape: f32[2,4,256], index: 7, kind: output, shape index: {}]
  %s8 = sld [smem:[#allocation0]]
  $region65: #{tpu_custom_call.1} parent=0
    _
  %s10 = ssub.s32 1, %s8
  %s11 = scalar_select 0, %s10, %s8
  %v12 = vstv %s6
  %13 = vst [vmem:[#allocation2] sm:$0x1] %v12
  $region1: #{tpu_custom_call.1} parent=0
    #allocation3 [shape = 'u8[16384]{0}', space=vmem, size = 0x4000, scoped, tag = 'input window, operand 0']
    #allocation4 [shape = 's32[2]{0}', space=sflag, size = 0x8, scoped, tag = 'scoped memory for tpu_custom_call.1']
    #allocation5 [shape = 's32[2]{0}', space=sflag, size = 0x8, scoped, tag = 'scoped memory for tpu_custom_call.1']
    #allocation6 [shape = 'u8[8192]{0}', space=vmem, size = 0x2000, scoped, tag = 'output window, operand 0']
    %14 = vsyncpa [#allocation4], 0
    %s15 = scalar_lea.sflag [#allocation4], 1
    %16 = vsyncpa %s15, 0
    %17 = vsyncpa [#allocation5], 0
    %s18 = scalar_lea.sflag [#allocation5], 1
    %19 = vsyncpa %s18, 0
    loop: start=0, step=1, limit=4
    $region2: #{tpu_custom_call.1} parent=1 // loop_pre_header
      _
    $region3: #{tpu_custom_call.1} parent=1 // loop_header
      %s21 = sphi 0, %s25
      %p22 = scmp.ge.s32.totalorder %s21, 4
      %s28 = sphi 0, %s40
      %s29 = sphi 0, %s36
      %s30 = sphi 0, %s28
      %s31 = sphi 0, %s29
      %s32 = sphi 0, %s30
      %s33 = sphi 0, %s31
      %s45 = sphi 0, %s47
      %s48 = sphi 0, %s45
      %s49 = sphi 0, %s48
      %s65 = sphi 0, %s49
      %s73 = sphi 0, %s75
      %s76 = sphi 0, %s73
      %s77 = sphi 0, %s76
      %s93 = sphi 0, %s77
      %s97 = sphi 0, %s97
      %s99 = sphi 0, %s97
      %s100 = sphi 0, %s99
      %s114 = sphi 0, %s100
      %s118 = sphi 0, %s118
      %s120 = sphi 0, %s118
      %s121 = sphi 0, %s120
      %s135 = sphi 0, %s121
      %s139 = sphi 0, %s139
      %s141 = sphi 0, %s139
      %s142 = sphi 0, %s141
      %s156 = sphi 0, %s142
      %s160 = sphi 0, %s160
      %s162 = sphi 0, %s160
      %s163 = sphi 0, %s162
      %s177 = sphi 0, %s163
      %s181 = sphi 0, %s181
      %s183 = sphi 0, %s181
      %s184 = sphi 0, %s183
      %s198 = sphi 0, %s184
      %s206 = sphi 0, %s208
      %s209 = sphi 0, %s206
      %s210 = sphi 0, %s209
      %s226 = sphi 0, %s210
    $region4: #{tpu_custom_call.1} parent=1 // loop_header_branch
      %24 = sbr.rel (%p22) target = $region8
    $region5: #{tpu_custom_call.1} parent=1 // loop_body
      %s26 = ssub.s32 %s21, 1
      %s27 = ssub.s32 %s21, 2
      %s34 = sadd.s32 1, %s29
      %p35 = scmp.ge.s32.totalorder %s34, 1
      %s36 = scalar_select %p35, 0, %s34
      %s37 = sadd.s32 1, %s28
      %s38 = scalar_select %p35, %s37, %s28
      %p39 = scmp.ge.s32.totalorder %s38, 2
      %s40 = scalar_select %p39, 0, %s38
      %s41 = ssub.s32 %s28, %s40
      %s42 = ssub.s32 %s29, %s36
      %s43 = sor.u32 %s41, %s42
      %p44 = scmp.eq.s32.totalorder %s43, 0
      %s46 = sadd.s32 %s45, 1
      %s47 = scalar_select %p44, %s45, %s46
      %p50 = pneg %p44
      %p51 = scmp.eq.s32.totalorder %s21, 1
      %p52 = por %p50, %p51
      %p53 = scmp.ne.s32.totalorder %s45, %s48
      %p54 = scmp.eq.s32.totalorder %s21, 0
      %p55 = por %p53, %p54
      %p56 = scmp.ne.s32.totalorder %s45, %s48
      %p57 = scmp.eq.s32.totalorder %s26, 1
      %p58 = por %p56, %p57
      %p59 = scmp.ne.s32.totalorder %s48, %s49
      %p60 = scmp.eq.s32.totalorder %s26, 0
      %p61 = por %p59, %p60
      %p62 = scmp.ne.s32.totalorder %s48, %s49
      %p63 = scmp.eq.s32.totalorder %s27, 1
      %p64 = por %p62, %p63
      %p66 = scmp.ne.s32.totalorder %s49, %s65
      %p67 = scmp.eq.s32.totalorder %s27, 0
      %p68 = por %p66, %p67
      %s69 = ssub.s32 %s28, %s40
      %s70 = ssub.s32 %s29, %s36
      %s71 = sor.u32 %s69, %s70
      %p72 = scmp.eq.s32.totalorder %s71, 0
      %s74 = sadd.s32 %s73, 1
      %s75 = scalar_select %p72, %s73, %s74
      %p78 = pneg %p72
      %p79 = scmp.eq.s32.totalorder %s21, 1
      %p80 = por %p78, %p79
      %p81 = scmp.ne.s32.totalorder %s73, %s76
      %p82 = scmp.eq.s32.totalorder %s21, 0
      %p83 = por %p81, %p82
      %p84 = scmp.ne.s32.totalorder %s73, %s76
      %p85 = scmp.eq.s32.totalorder %s26, 1
      %p86 = por %p84, %p85
      %p87 = scmp.ne.s32.totalorder %s76, %s77
      %p88 = scmp.eq.s32.totalorder %s26, 0
      %p89 = por %p87, %p88
      %p90 = scmp.ne.s32.totalorder %s76, %s77
      %p91 = scmp.eq.s32.totalorder %s27, 1
      %p92 = por %p90, %p91
      %p94 = scmp.ne.s32.totalorder %s77, %s93
      %p95 = scmp.eq.s32.totalorder %s27, 0
      %p96 = por %p94, %p95
      %s98 = sadd.s32 %s97, 1
      %p101 = scmp.eq.s32.totalorder %s21, 1
      %p102 = scmp.ne.s32.totalorder %s97, %s99
      %p103 = scmp.eq.s32.totalorder %s21, 0
      %p104 = por %p102, %p103
      %p105 = scmp.ne.s32.totalorder %s97, %s99
      %p106 = scmp.eq.s32.totalorder %s26, 1
      %p107 = por %p105, %p106
      %p108 = scmp.ne.s32.totalorder %s99, %s100
      %p109 = scmp.eq.s32.totalorder %s26, 0
      %p110 = por %p108, %p109
      %p111 = scmp.ne.s32.totalorder %s99, %s100
      %p112 = scmp.eq.s32.totalorder %s27, 1
      %p113 = por %p111, %p112
      %p115 = scmp.ne.s32.totalorder %s100, %s114
      %p116 = scmp.eq.s32.totalorder %s27, 0
      %p117 = por %p115, %p116
      %s119 = sadd.s32 %s118, 1
      %p122 = scmp.eq.s32.totalorder %s21, 1
      %p123 = scmp.ne.s32.totalorder %s118, %s120
      %p124 = scmp.eq.s32.totalorder %s21, 0
      %p125 = por %p123, %p124
      %p126 = scmp.ne.s32.totalorder %s118, %s120
      %p127 = scmp.eq.s32.totalorder %s26, 1
      %p128 = por %p126, %p127
      %p129 = scmp.ne.s32.totalorder %s120, %s121
      %p130 = scmp.eq.s32.totalorder %s26, 0
      %p131 = por %p129, %p130
      %p132 = scmp.ne.s32.totalorder %s120, %s121
      %p133 = scmp.eq.s32.totalorder %s27, 1
      %p134 = por %p132, %p133
      %p136 = scmp.ne.s32.totalorder %s121, %s135
      %p137 = scmp.eq.s32.totalorder %s27, 0
      %p138 = por %p136, %p137
      %s140 = sadd.s32 %s139, 1
      %p143 = scmp.eq.s32.totalorder %s21, 1
      %p144 = scmp.ne.s32.totalorder %s139, %s141
      %p145 = scmp.eq.s32.totalorder %s21, 0
      %p146 = por %p144, %p145
      %p147 = scmp.ne.s32.totalorder %s139, %s141
      %p148 = scmp.eq.s32.totalorder %s26, 1
      %p149 = por %p147, %p148
      %p150 = scmp.ne.s32.totalorder %s141, %s142
      %p151 = scmp.eq.s32.totalorder %s26, 0
      %p152 = por %p150, %p151
      %p153 = scmp.ne.s32.totalorder %s141, %s142
      %p154 = scmp.eq.s32.totalorder %s27, 1
      %p155 = por %p153, %p154
      %p157 = scmp.ne.s32.totalorder %s142, %s156
      %p158 = scmp.eq.s32.totalorder %s27, 0
      %p159 = por %p157, %p158
      %s161 = sadd.s32 %s160, 1
      %p164 = scmp.eq.s32.totalorder %s21, 1
      %p165 = scmp.ne.s32.totalorder %s160, %s162
      %p166 = scmp.eq.s32.totalorder %s21, 0
      %p167 = por %p165, %p166
      %p168 = scmp.ne.s32.totalorder %s160, %s162
      %p169 = scmp.eq.s32.totalorder %s26, 1
      %p170 = por %p168, %p169
      %p171 = scmp.ne.s32.totalorder %s162, %s163
      %p172 = scmp.eq.s32.totalorder %s26, 0
      %p173 = por %p171, %p172
      %p174 = scmp.ne.s32.totalorder %s162, %s163
      %p175 = scmp.eq.s32.totalorder %s27, 1
      %p176 = por %p174, %p175
      %p178 = scmp.ne.s32.totalorder %s163, %s177
      %p179 = scmp.eq.s32.totalorder %s27, 0
      %p180 = por %p178, %p179
      %s182 = sadd.s32 %s181, 1
      %p185 = scmp.eq.s32.totalorder %s21, 1
      %p186 = scmp.ne.s32.totalorder %s181, %s183
      %p187 = scmp.eq.s32.totalorder %s21, 0
      %p188 = por %p186, %p187
      %p189 = scmp.ne.s32.totalorder %s181, %s183
      %p190 = scmp.eq.s32.totalorder %s26, 1
      %p191 = por %p189, %p190
      %p192 = scmp.ne.s32.totalorder %s183, %s184
      %p193 = scmp.eq.s32.totalorder %s26, 0
      %p194 = por %p192, %p193
      %p195 = scmp.ne.s32.totalorder %s183, %s184
      %p196 = scmp.eq.s32.totalorder %s27, 1
      %p197 = por %p195, %p196
      %p199 = scmp.ne.s32.totalorder %s184, %s198
      %p200 = scmp.eq.s32.totalorder %s27, 0
      %p201 = por %p199, %p200
      %s202 = ssub.s32 %s28, %s40
      %s203 = ssub.s32 %s29, %s36
      %s204 = sor.u32 %s202, %s203
      %p205 = scmp.eq.s32.totalorder %s204, 0
      %s207 = sadd.s32 %s206, 1
      %s208 = scalar_select %p205, %s206, %s207
      %p211 = pneg %p205
      %p212 = scmp.eq.s32.totalorder %s21, 1
      %p213 = por %p211, %p212
      %p214 = scmp.ne.s32.totalorder %s206, %s209
      %p215 = scmp.eq.s32.totalorder %s21, 0
      %p216 = por %p214, %p215
      %p217 = scmp.ne.s32.totalorder %s206, %s209
      %p218 = scmp.eq.s32.totalorder %s26, 1
      %p219 = por %p217, %p218
      %p220 = scmp.ne.s32.totalorder %s209, %s210
      %p221 = scmp.eq.s32.totalorder %s26, 0
      %p222 = por %p220, %p221
      %p223 = scmp.ne.s32.totalorder %s209, %s210
      %p224 = scmp.eq.s32.totalorder %s27, 1
      %p225 = por %p223, %p224
      %p227 = scmp.ne.s32.totalorder %s210, %s226
      %p228 = scmp.eq.s32.totalorder %s27, 0
      %p229 = por %p227, %p228
      %p230 = scmp.le.s32.totalorder 1, %s21
      %p231 = scmp.lt.s32.totalorder %s21, 3
      %p232 = pnand %p230, %p231
      %p233 = pneg %p232
      // Predicated region
      $region9: #{tpu_custom_call.1} parent=5 // pred_check
        _
      $region10: #{tpu_custom_call.1} parent=5 // pred_check_branch
        %235 = sbr.rel (%p232) target = $region12
      $region11: #{tpu_custom_call.1} parent=5 // pred_region
        %s236 = ssub.s32 %s21, 1
        // Predicated region
        $region13: #{tpu_custom_call.1} parent=11 // pred_check
          %p237 = pneg %p110
        $region14: #{tpu_custom_call.1} parent=11 // pred_check_branch
          %239 = sbr.rel (%p237) target = $region16
        $region15: #{tpu_custom_call.1} parent=11 // pred_region
          _
        $region16: #{tpu_custom_call.1} parent=11 // pred_fallthru
          _
        // Predicated region
        $region17: #{tpu_custom_call.1} parent=11 // pred_check
          %p240 = pneg %p131
        $region18: #{tpu_custom_call.1} parent=11 // pred_check_branch
          %242 = sbr.rel (%p240) target = $region20
        $region19: #{tpu_custom_call.1} parent=11 // pred_region
          _
        $region20: #{tpu_custom_call.1} parent=11 // pred_fallthru
          _
        // Predicated region
        $region21: #{tpu_custom_call.1} parent=11 // pred_check
          %p243 = pneg %p152
        $region22: #{tpu_custom_call.1} parent=11 // pred_check_branch
          %245 = sbr.rel (%p243) target = $region24
        $region23: #{tpu_custom_call.1} parent=11 // pred_region
          _
        $region24: #{tpu_custom_call.1} parent=11 // pred_fallthru
          _
        // Predicated region
        $region25: #{tpu_custom_call.1} parent=11 // pred_check
          %p246 = pneg %p173
        $region26: #{tpu_custom_call.1} parent=11 // pred_check_branch
          %248 = sbr.rel (%p246) target = $region28
        $region27: #{tpu_custom_call.1} parent=11 // pred_region
          _
        $region28: #{tpu_custom_call.1} parent=11 // pred_fallthru
          _
        // Predicated region
        $region29: #{tpu_custom_call.1} parent=11 // pred_check
          %p249 = pneg %p194
        $region30: #{tpu_custom_call.1} parent=11 // pred_check_branch
          %251 = sbr.rel (%p249) target = $region32
        $region31: #{tpu_custom_call.1} parent=11 // pred_region
          _
        $region32: #{tpu_custom_call.1} parent=11 // pred_fallthru
          _
      $region12: #{tpu_custom_call.1} parent=5 // pred_fallthru
        _
      %p252 = scmp.lt.s32.totalorder %s21, 2
      // Predicated region
      $region33: #{tpu_custom_call.1} parent=5 // pred_check
        %p253 = pneg %p252
      $region34: #{tpu_custom_call.1} parent=5 // pred_check_branch
        %255 = sbr.rel (%p253) target = $region36
      $region35: #{tpu_custom_call.1} parent=5 // pred_region
        // Predicated region
        $region37: #{tpu_custom_call.1} parent=35 // pred_check
          %p256 = pneg %p55
        $region38: #{tpu_custom_call.1} parent=35 // pred_check_branch
          %258 = sbr.rel (%p256) target = $region40
        $region39: #{tpu_custom_call.1} parent=35 // pred_region
          %s259 = sand.u32 %s45, 1
          %s260 = scalar_lea.sflag [#allocation4], %s259
          %s261 = sand.u32 %s45, 1
          %s262 = smul.addr %s261, 16
          %s263 = scalar_lea.vmem [#allocation3], %s262
          %s264 = smul.u32 2, %s29
          %s266 = ssub.s32 256, 256
          %267 = vsyncadd %s260, %s266
          %s268 = smul.addr %s28, 2
          %s269 = sadd.s32 %s264, %s268
          %s270 = smul.addr %s269, 128
          %s271 = scalar_lea.hbm %s0, %s270
          %s273 = sshll.u32 %s263, 4
          %s274 = int_to_ptr.vmem [resolvable:$true] %s273
          %276 = dma.hbm_to_vmem [thread:$0]  %s271, 256, %s274, %s260
        $region40: #{tpu_custom_call.1} parent=35 // pred_fallthru
          _
        // Predicated region
        $region41: #{tpu_custom_call.1} parent=35 // pred_check
          %p277 = pneg %p83
        $region42: #{tpu_custom_call.1} parent=35 // pred_check_branch
          %279 = sbr.rel (%p277) target = $region44
        $region43: #{tpu_custom_call.1} parent=35 // pred_region
          %s280 = smul.u32 2, %s29
          %p281 = scmp.lt.s32.totalorder %s28, 1
          %s282 = scalar_select %p281, %s28, 1
          %p283 = scmp.lt.s32.totalorder %s280, 1
          %s284 = scalar_select %p283, %s280, 1
          %s285 = smul.addr %s282, 2
          %s286 = sadd.s32 %s284, %s285
          %s287 = smul.addr %s286, 4
          %s288 = scalar_lea.vmem %s1, %s287
          %s289 = smul.u32 2, %s29
        $region44: #{tpu_custom_call.1} parent=35 // pred_fallthru
          _
      $region36: #{tpu_custom_call.1} parent=5 // pred_fallthru
        _
      %p290 = scmp.le.s32.totalorder 1, %s21
      %p291 = scmp.lt.s32.totalorder %s21, 3
      %p292 = pnand %p290, %p291
      %p293 = pneg %p292
      // Predicated region
      $region45: #{tpu_custom_call.1} parent=5 // pred_check
        _
      $region46: #{tpu_custom_call.1} parent=5 // pred_check_branch
        %295 = sbr.rel (%p292) target = $region48
      $region47: #{tpu_custom_call.1} parent=5 // pred_region
        %s296 = ssub.s32 %s21, 1
        %s297 = sand.u32 %s48, 1
        %s298 = scalar_lea.sflag [#allocation4], %s297
        %s299 = sand.u32 %s48, 1
        %s300 = smul.addr %s299, 16
        %s301 = scalar_lea.vmem [#allocation3], %s300
        // Predicated region
        $region49: #{tpu_custom_call.1} parent=47 // pred_check
          %p302 = pneg %p61
        $region50: #{tpu_custom_call.1} parent=47 // pred_check_branch
          %304 = sbr.rel (%p302) target = $region52
        $region51: #{tpu_custom_call.1} parent=47 // pred_region
          %305 = dma.done %s298, 256
        $region52: #{tpu_custom_call.1} parent=47 // pred_fallthru
          _
        %s306 = sand.u32 %s48, 1
        %s307 = scalar_lea.sflag [#allocation4], %s306
        %s308 = sand.u32 %s48, 1
        %s309 = smul.addr %s308, 16
        %s310 = scalar_lea.vmem [#allocation3], %s309
        %p311 = pneg %p61
        %p312 = pneg %p58
        %s313 = smul.u32 2, %s31
        %p314 = scmp.lt.s32.totalorder %s30, 1
        %s315 = scalar_select %p314, %s30, 1
        %p316 = scmp.lt.s32.totalorder %s313, 1
        %s317 = scalar_select %p316, %s313, 1
        %s318 = smul.addr %s315, 2
        %s319 = sadd.s32 %s317, %s318
        %s320 = smul.addr %s319, 4
        %s321 = scalar_lea.vmem %s1, %s320
        %p322 = pneg %p89
        %p323 = pneg %p86
        %p324 = pneg %p110
        %p325 = pneg %p107
        %p326 = pneg %p131
        %p327 = pneg %p128
        %p328 = pneg %p152
        %p329 = pneg %p149
        %p330 = pneg %p173
        %p331 = pneg %p170
        %p332 = pneg %p194
        %p333 = pneg %p191
        %p334 = pneg %p222
        %p335 = pneg %p219
        %s336 = sand.u32 %s209, 1
        %s337 = scalar_lea.sflag [#allocation5], %s336
        %s338 = sand.u32 %s209, 1
        %s339 = smul.addr %s338, 8
        %s340 = scalar_lea.vmem [#allocation6], %s339
        %s341 = smul.u32 2, %s31
        %s342 = smul.u32 2, %s31
        %p343 = scmp.lt.s32.totalorder %s30, 1
        %s344 = scalar_select %p343, %s30, 1
        %p345 = scmp.lt.s32.totalorder %s342, 1
        %s346 = scalar_select %p345, %s342, 1
        %s347 = smul.addr %s344, 2
        %s348 = sadd.s32 %s346, %s347
        %s349 = smul.addr %s348, 4
        %s350 = scalar_lea.vmem %s1, %s349
        %s351 = smul.u32 2, %s31
        %s352 = smul.u32 2, %s31
        %v353 = vld [vmem:[%s301] sm:$0xff]
        %v354 = vld [vmem:[%s301 + $0x8] sm:$0xff]
        %v355 = vld [vmem:[%s350] sm:$0xff]
        %v356 = vld [vmem:[%s2] sm:$0xf]
        %v357 = vld [vmem:[%s3] sm:$0xf]
        %v359 = vcombine.high %v355, %v355
        %vm360 = vcmask 31744
        %v362 = vsel %vm360, %v357, 0
        %vm364 = vcmask 1043456
        %v365 = vsel %vm364, %v355, 0
        %v367 = vsel %vm364, %v359, 0
        %369 = vmatprep.subr.mxu0 %v367
        %370 = vmatpush1.msra.mxu0 %v365
        %371 = vmatprep.subr.mxu0 0.0
        %372 = vmatpush1.msra.mxu0 0.0
        %373 = vmatprep.subr.mxu0 0.0
        %374 = vmatpush1.msra.mxu0 0.0
        %375 = vmatprep.subr.mxu0 0.0
        %376 = vmatpush1.msra.mxu0 0.0
        %377 = vmatprep.subr.mxu0 0.0
        %378 = vmatpush1.msra.mxu0 0.0
        %379 = vmatprep.subr.mxu0 0.0
        %380 = vmatpush1.msra.mxu0 0.0
        %381 = vmatprep.subr.mxu0 0.0
        %382 = vmatpush1.msra.mxu0 0.0
        %383 = vmatprep.subr.mxu0 0.0
        %384 = vmatpush1.msra.mxu0 0.0
        %385 = vmatprep.subr.mxu0 0.0
        %386 = vmatpush1.msra.mxu0 0.0
        %387 = vmatprep.subr.mxu0 0.0
        %388 = vmatpush1.msra.mxu0 0.0
        %389 = vmatprep.subr.mxu0 0.0
        %390 = vmatpush1.msra.mxu0 0.0
        %391 = vmatprep.subr.mxu0 0.0
        %392 = vmatpush1.msra.mxu0 0.0
        %393 = vmatprep.subr.mxu0 0.0
        %394 = vmatpush1.msra.mxu0 0.0
        %395 = vmatprep.subr.mxu0 0.0
        %396 = vmatpush1.msra.mxu0 0.0
        %397 = vmatprep.subr.mxu0 0.0
        %398 = vmatpush1.msra.mxu0 0.0
        %399 = vmatprep.subr.mxu0 0.0
        %400 = vmatpush1.msra.mxu0 0.0
        %401 = vmatprep.subr.mxu0 0.0
        %402 = vmatpush1.msra.mxu0 0.0
        %403 = vmatprep.subr.mxu0 0.0
        %404 = vmatpush1.msra.mxu0 0.0
        %405 = vmatprep.subr.mxu0 0.0
        %406 = vmatpush1.msra.mxu0 0.0
        %407 = vmatprep.subr.mxu0 0.0
        %408 = vmatpush1.msra.mxu0 0.0
        %409 = vmatprep.subr.mxu0 0.0
        %410 = vmatpush1.msra.mxu0 0.0
        %411 = vmatprep.subr.mxu0 0.0
        %412 = vmatpush1.msra.mxu0 0.0
        %413 = vmatprep.subr.mxu0 0.0
        %414 = vmatpush1.msra.mxu0 0.0
        %415 = vmatprep.subr.mxu0 0.0
        %416 = vmatpush1.msra.mxu0 0.0
        %417 = vmatprep.subr.mxu0 0.0
        %418 = vmatpush1.msra.mxu0 0.0
        %419 = vmatprep.subr.mxu0 0.0
        %420 = vmatpush1.msra.mxu0 0.0
        %421 = vmatprep.subr.mxu0 0.0
        %422 = vmatpush1.msra.mxu0 0.0
        %423 = vmatprep.subr.mxu0 0.0
        %424 = vmatpush1.msra.mxu0 0.0
        %425 = vmatprep.subr.mxu0 0.0
        %426 = vmatpush1.msra.mxu0 0.0
        %427 = vmatprep.subr.mxu0 0.0
        %428 = vmatpush1.msra.mxu0 0.0
        %429 = vmatprep.subr.mxu0 0.0
        %430 = vmatpush1.msra.mxu0 0.0
        %431 = vmatprep.subr.mxu0 0.0
        %432 = vmatpush1.msra.mxu0 0.0
        %433 = vmatprep.mubr.f32.mxu0 0.0
        %434 = vmatmul.mubr.f32.gmra.mrb[0].mxu0 %v362
        %v435 = vpop.f32.mrb[0].mxu0
        %v436 = vadd.f32 0.0, %v435
        %v437 = vpop.f32.mrb[0].mxu0
        %v438 = vadd.f32 0.0, %v437
        %439 = vdwg.mxu0
        %vm440 = vcmask 64512
        %v442 = vsel %vm440, %v356, 0
        %444 = vmatprep.subr.mxu0 %v354
        %445 = vmatpush1.msra.mxu0 %v353
        %446 = vmatprep.subr.mxu0 0.0
        %447 = vmatpush1.msra.mxu0 0.0
        %448 = vmatprep.subr.mxu0 0.0
        %449 = vmatpush1.msra.mxu0 0.0
        %450 = vmatprep.subr.mxu0 0.0
        %451 = vmatpush1.msra.mxu0 0.0
        %452 = vmatprep.subr.mxu0 0.0
        %453 = vmatpush1.msra.mxu0 0.0
        %454 = vmatprep.subr.mxu0 0.0
        %455 = vmatpush1.msra.mxu0 0.0
        %456 = vmatprep.subr.mxu0 0.0
        %457 = vmatpush1.msra.mxu0 0.0
        %458 = vmatprep.subr.mxu0 0.0
        %459 = vmatpush1.msra.mxu0 0.0
        %460 = vmatprep.subr.mxu0 0.0
        %461 = vmatpush1.msra.mxu0 0.0
        %462 = vmatprep.subr.mxu0 0.0
        %463 = vmatpush1.msra.mxu0 0.0
        %464 = vmatprep.subr.mxu0 0.0
        %465 = vmatpush1.msra.mxu0 0.0
        %466 = vmatprep.subr.mxu0 0.0
        %467 = vmatpush1.msra.mxu0 0.0
        %468 = vmatprep.subr.mxu0 0.0
        %469 = vmatpush1.msra.mxu0 0.0
        %470 = vmatprep.subr.mxu0 0.0
        %471 = vmatpush1.msra.mxu0 0.0
        %472 = vmatprep.subr.mxu0 0.0
        %473 = vmatpush1.msra.mxu0 0.0
        %474 = vmatprep.subr.mxu0 0.0
        %475 = vmatpush1.msra.mxu0 0.0
        %476 = vmatprep.subr.mxu0 0.0
        %477 = vmatpush1.msra.mxu0 0.0
        %478 = vmatprep.subr.mxu0 0.0
        %479 = vmatpush1.msra.mxu0 0.0
        %480 = vmatprep.subr.mxu0 0.0
        %481 = vmatpush1.msra.mxu0 0.0
        %482 = vmatprep.subr.mxu0 0.0
        %483 = vmatpush1.msra.mxu0 0.0
        %484 = vmatprep.subr.mxu0 0.0
        %485 = vmatpush1.msra.mxu0 0.0
        %486 = vmatprep.subr.mxu0 0.0
        %487 = vmatpush1.msra.mxu0 0.0
        %488 = vmatprep.subr.mxu0 0.0
        %489 = vmatpush1.msra.mxu0 0.0
        %490 = vmatprep.subr.mxu0 0.0
        %491 = vmatpush1.msra.mxu0 0.0
        %492 = vmatprep.subr.mxu0 0.0
        %493 = vmatpush1.msra.mxu0 0.0
        %494 = vmatprep.subr.mxu0 0.0
        %495 = vmatpush1.msra.mxu0 0.0
        %496 = vmatprep.subr.mxu0 0.0
        %497 = vmatpush1.msra.mxu0 0.0
        %498 = vmatprep.subr.mxu0 0.0
        %499 = vmatpush1.msra.mxu0 0.0
        %500 = vmatprep.subr.mxu0 0.0
        %501 = vmatpush1.msra.mxu0 0.0
        %502 = vmatprep.subr.mxu0 0.0
        %503 = vmatpush1.msra.mxu0 0.0
        %504 = vmatprep.subr.mxu0 0.0
        %505 = vmatpush1.msra.mxu0 0.0
        %506 = vmatprep.subr.mxu0 0.0
        %507 = vmatpush1.msra.mxu0 0.0
        %508 = vmatprep.mubr.f32.mxu0 0.0
        %509 = vmatmul.mubr.f32.gmra.mrb[0].mxu0 %v442
        %v510 = vpop.f32.mrb[0].mxu0
        %v511 = vadd.f32 %v436, %v510
        %v512 = vpop.f32.mrb[0].mxu0
        %v513 = vadd.f32 %v438, %v512
        %514 = vdwg.mxu0
        %v515 = vld [vmem:[%s4] sm:$0xf]
        %517 = vset.pattern.permute.xlu0 0
        %518 = vperm.xlu0 %517, %v515
        %v519 = vpop.permute.xlu0 %518
        %v521 = vadd.f32 %v511, %v519
        %v522 = vadd.f32 %v513, %v519
        %v523 = vmax.f32 %v521, 0.0
        %v524 = vmax.f32 %v522, 0.0
        %v525 = vld [vmem:[%s5] sm:$0xf]
        %527 = vset.pattern.permute.xlu0 0
        %528 = vperm.xlu0 %527, %v525
        %v529 = vpop.permute.xlu0 %528
        %v531 = vmul.f32 %v523, %v529
        %v532 = vmul.f32 %v524, %v529
        %v533 = vsel %vm364, %v531, 0.0
        %v534 = vrot.slane %v533, 4
        %v535 = vadd.f32 %v533, %v534
        %v536 = vrot.slane %v535, 2
        %v537 = vadd.f32 %v535, %v536
        %v538 = vrot.slane %v537, 1
        %v539 = vadd.f32 %v537, %v538
        %v540 = vsel %vm364, %v532, 0.0
        %v541 = vrot.slane %v540, 4
        %v542 = vadd.f32 %v540, %v541
        %v543 = vrot.slane %v542, 2
        %v544 = vadd.f32 %v542, %v543
        %v545 = vrot.slane %v544, 1
        %v546 = vadd.f32 %v544, %v545
        %v547 = vld [vmem:[#allocation2] sm:$0x1]
        %549 = vset.pattern.permute.xlu0 0
        %550 = vperm.xlu0 %549, %v547
        %v551 = vpop.permute.xlu0 %550
        %v553 = vlaneseq
        %v554 = vshrl.u32 %v553, 7
        %v555 = vsub.s32 0, %v554
        %v556 = vrot.slane %v551, %v555
        %v557 = vadd.f32 %v539, %v556
        %v558 = vadd.f32 %v546, %v556
        %v559 = vsub.f32 0.0, %v557
        %v560 = vsub.f32 0.0, %v558
        %v561 = vmul.f32 %v559, 1.442695
        %v562 = vpow.pop %v561
        %v563 = vmul.f32 %v560, 1.442695
        %v564 = vpow.pop %v563
        %v565 = vadd.f32 %v562, 1.0
        %v566 = vadd.f32 %v564, 1.0
        %v567 = vrcp.pop %v565
        %v568 = vmul.f32 1.0, %v567
        %v569 = vrcp.pop %v566
        %v570 = vmul.f32 1.0, %v569
        %v573 = vcombine.low %v568, %v570
        %v575 = vmul.f32 %v355, %v573
        %576 = vst [vmem:[%s340] sm:$0xff] %v575
        %s577 = sand.u32 %s209, 1
        %s578 = scalar_lea.sflag [#allocation5], %s577
        %s579 = sand.u32 %s209, 1
        %s580 = smul.addr %s579, 8
        %s581 = scalar_lea.vmem [#allocation6], %s580
        // Predicated region
        $region53: #{tpu_custom_call.1} parent=47 // pred_check
          %p582 = pneg %p219
        $region54: #{tpu_custom_call.1} parent=47 // pred_check_branch
          %584 = sbr.rel (%p582) target = $region56
        $region55: #{tpu_custom_call.1} parent=47 // pred_region
          %s585 = smul.u32 2, %s31
          %s587 = ssub.s32 128, 128
          %588 = vsyncadd %s578, %s587
          %s589 = smul.addr %s30, 2
          %s590 = sadd.s32 %s585, %s589
          %s591 = smul.addr %s590, 64
          %s592 = scalar_lea.hbm %s7, %s591
          %s594 = sshll.u32 %s581, 4
          %s595 = int_to_ptr.vmem [resolvable:$true] %s594
          %597 = dma.vmem_to_hbm [thread:$0]  %s595, 128, %s592, %s578
        $region56: #{tpu_custom_call.1} parent=47 // pred_fallthru
          _
      $region48: #{tpu_custom_call.1} parent=5 // pred_fallthru
        _
      %p598 = scmp.le.s32.totalorder 2, %s21
      // Predicated region
      $region57: #{tpu_custom_call.1} parent=5 // pred_check
        %p599 = pneg %p598
      $region58: #{tpu_custom_call.1} parent=5 // pred_check_branch
        %601 = sbr.rel (%p599) target = $region60
      $region59: #{tpu_custom_call.1} parent=5 // pred_region
        %s602 = ssub.s32 %s21, 2
        // Predicated region
        $region61: #{tpu_custom_call.1} parent=59 // pred_check
          %p603 = pneg %p225
        $region62: #{tpu_custom_call.1} parent=59 // pred_check_branch
          %605 = sbr.rel (%p603) target = $region64
        $region63: #{tpu_custom_call.1} parent=59 // pred_region
          %s606 = sand.u32 %s210, 1
          %s607 = scalar_lea.sflag [#allocation5], %s606
          %s608 = sand.u32 %s210, 1
          %s609 = smul.addr %s608, 8
          %s610 = scalar_lea.vmem [#allocation6], %s609
          %611 = dma.done %s607, 128
        $region64: #{tpu_custom_call.1} parent=59 // pred_fallthru
          _
      $region60: #{tpu_custom_call.1} parent=5 // pred_fallthru
        _
    $region6: #{tpu_custom_call.1} parent=1 // loop_footer
      %s25 = sadd.s32 1, %s21
    $region7: #{tpu_custom_call.1} parent=1 // loop_footer_branch
      %20 = sbr.rel target = $region3
    $region8: #{tpu_custom_call.1} parent=1 // loop_exit
      _
    %612 = vsyncpa [#allocation4], 1
    %s613 = scalar_lea.sflag [#allocation4], 1
    %614 = vsyncpa %s613, 1
    %615 = vsyncpa [#allocation5], 1
    %s616 = scalar_lea.sflag [#allocation5], 1
    %617 = vsyncpa %s616, 1

</llo_original>
